<compile_context>
chip_gen: v5e
topology: v5e:2x2
jax: 0.10.0
libtpu: 0.0.40
codegen_flags: <defaults>
</compile_context>

<pallas_src>
import jax
import jax.numpy as jnp
from jax.experimental import pallas as pl
from jax.experimental.pallas import tpu as pltpu


_PAD_WIDTH = 128  # pad the 16-wide hidden layers to a full lane width (zeros preserve the result)


def _round_up(n, m):
    return ((n + m - 1) // m) * m


def _mlp_kernel(x_ref, w1_ref, b1_ref, w2_ref, b2_ref, w3_ref, b3_ref, o_ref):
    # All elementwise math and accumulation in f32 (narrow dtypes only at the HBM boundary).
    x = x_ref[...].astype(jnp.float32)                              # x.to(torch.float32)

    h = jnp.dot(x, w1_ref[...], preferred_element_type=jnp.float32) + b1_ref[...]
    h = jnp.maximum(h, 0.0)                                         # Linear(in,16)+ReLU (padded to 128)

    h = jnp.dot(h, w2_ref[...], preferred_element_type=jnp.float32) + b2_ref[...]
    h = jnp.maximum(h, 0.0)                                         # Linear(16,16)+ReLU (padded to 128)

    h = jnp.dot(h, w3_ref[...], preferred_element_type=jnp.float32) + b3_ref[...]
    h = jnp.maximum(h, 0.0)                                         # Linear(16,hidden)+ReLU

    o_ref[...] = h.astype(o_ref.dtype)


def pad_params_for_kernel(params):
    """Zero-pad the 16-wide hidden layers to 128 lanes. Zeros in the padded weight
    columns/rows and biases make the padded lanes exactly 0 after ReLU, so the
    result is identical to the unpadded computation."""
    w1, b1 = params["w1"], params["b1"]
    w2, b2 = params["w2"], params["b2"]
    w3, b3 = params["w3"], params["b3"]
    p = _PAD_WIDTH
    w1p = jnp.zeros((w1.shape[0], p), w1.dtype).at[:, : w1.shape[1]].set(w1)
    b1p = jnp.zeros((1, p), b1.dtype).at[:, : b1.shape[1]].set(b1)
    w2p = jnp.zeros((p, p), w2.dtype).at[: w2.shape[0], : w2.shape[1]].set(w2)
    b2p = jnp.zeros((1, p), b2.dtype).at[:, : b2.shape[1]].set(b2)
    w3p = jnp.zeros((p, w3.shape[1]), w3.dtype).at[: w3.shape[0], :].set(w3)
    return {"w1": w1p, "b1": b1p, "w2": w2p, "b2": b2p, "w3": w3p, "b3": b3}


def model_free_agent_forward(x, padded_params, *, block_b=4096, out_dtype=jnp.float32):
    """ModelFreeAgent.forward as a batch-tiled Pallas kernel.

    x:              (B, in_shape) array (any float dtype; cast to f32 like the PyTorch code).
    padded_params:  output of pad_params_for_kernel (weights as (in, out), biases as (1, out)).
    block_b:        max batch tile (rows per grid step). 4096 keeps double-buffered tiles
                    ~13 MiB (fits v5e's 16 MiB default scoped VMEM); larger values raise
                    vmem_limit_bytes automatically (clamped under v7x's 64 MiB physical).
    out_dtype:      jnp.float32 (exact PyTorch parity, default) or jnp.bfloat16
                    (recommended when downstream permits: halves HBM writeback, which is
                    ~90% of this kernel's bytes; accumulation/ReLU remain f32).
    Returns: (B, hidden_dim) array of out_dtype.
    """
    B, in_shape = x.shape
    hidden = padded_params["w3"].shape[1]

    # Batch tile: multiple of 8 (sublane), at most block_b. Ensure >= 2 grid steps
    # whenever possible so the "parallel" batch axis uses both TensorCores on v7x.
    bt = min(block_b, _round_up(B, 8))
    if B > 8 and pl.cdiv(B, bt) < 2:
        bt = _round_up(pl.cdiv(B, 2), 8)
    n_b = pl.cdiv(B, bt)

    w1, b1 = padded_params["w1"], padded_params["b1"]
    w2, b2 = padded_params["w2"], padded_params["b2"]
    w3, b3 = padded_params["w3"], padded_params["b3"]

    def const_spec(a):
        return pl.BlockSpec(a.shape, lambda i, _nd=a.ndim: (0,) * _nd)

    # Advisory cost hint (true algorithmic flops; bytes at the HBM boundary).
    flops = 2 * B * (in_shape * 16 + 16 * 16 + 16 * hidden)
    bytes_accessed = (
        x.size * x.dtype.itemsize
        + B * hidden * jnp.dtype(out_dtype).itemsize
        + sum(a.size * a.dtype.itemsize for a in (w1, b1, w2, b2, w3, b3))
    )

    # VMEM budget (lane-padded tiles, double-buffered). Raise the scoped limit only when
    # it would exceed the smallest default (v5e: 16 MiB); clamp under v7x's 64 MiB physical.
    weights_bytes = sum(a.size * a.dtype.itemsize for a in (w1, b1, w2, b2, w3, b3))
    x_tile_bytes = bt * max(_round_up(in_shape, 128), 128) * x.dtype.itemsize
    out_tile_bytes = bt * max(_round_up(hidden, 128), 128) * jnp.dtype(out_dtype).itemsize
    vmem_needed = 2 * weights_bytes + 2 * x_tile_bytes + 2 * out_tile_bytes + (2 << 20)
    compiler_kwargs = dict(dimension_semantics=("parallel",))
    if vmem_needed > (16 << 20):
        compiler_kwargs["vmem_limit_bytes"] = int(min(max(vmem_needed, 32 << 20), 56 << 20))

    # Ragged last block (B % bt != 0) is handled by Pallas masked output writes; padded
    # rows inside the last tile are never relied upon to be zero.
    out = pl.pallas_call(
        _mlp_kernel,
        out_shape=jax.ShapeDtypeStruct((B, hidden), out_dtype),
        grid=(n_b,),
        in_specs=[
            pl.BlockSpec((bt, in_shape), lambda i: (i, 0)),   # x: tiled over batch
            const_spec(w1), const_spec(b1),                   # weights: VMEM-resident
            const_spec(w2), const_spec(b2),
            const_spec(w3), const_spec(b3),
        ],
        out_specs=pl.BlockSpec((bt, hidden), lambda i: (i, 0)),
        compiler_params=pltpu.CompilerParams(**compiler_kwargs),
        cost_estimate=pl.CostEstimate(
            flops=flops, transcendentals=0, bytes_accessed=bytes_accessed),
    )(x, w1, b1, w2, b2, w3, b3)

    return out


def init_params(key, in_shape, num_actions, hidden_dim=256):
    """Deterministic synthetic init (PyTorch nn.Linear-style uniform bounds).
    Weights stored as (in_features, out_features), biases as (1, out_features)."""
    def linear(key, fan_in, fan_out):
        kw, kb = jax.random.split(key)
        bound = 1.0 / jnp.sqrt(jnp.float32(fan_in))
        w = jax.random.uniform(kw, (fan_in, fan_out), jnp.float32, -bound, bound)
        b = jax.random.uniform(kb, (1, fan_out), jnp.float32, -bound, bound)
        return w, b

    k1, k2, k3, k4, k5 = jax.random.split(key, 5)
    w1, b1 = linear(k1, in_shape, 16)
    w2, b2 = linear(k2, 16, 16)
    w3, b3 = linear(k3, 16, hidden_dim)
    # critic / actor heads (unused in forward, kept for parity with __init__)
    wc, bc = linear(k4, hidden_dim, 1)
    wa, ba = linear(k5, hidden_dim, num_actions)
    return {"w1": w1, "b1": b1, "w2": w2, "b2": b2, "w3": w3, "b3": b3,
            "wc": wc, "bc": bc, "wa": wa, "ba": ba}


def _ref_forward(x, p):
    h = jnp.maximum(x.astype(jnp.float32) @ p["w1"] + p["b1"], 0.0)
    h = jnp.maximum(h @ p["w2"] + p["b2"], 0.0)
    h = jnp.maximum(h @ p["w3"] + p["b3"], 0.0)
    return h


if __name__ == "__main__":
    key = jax.random.PRNGKey(0)
    k_params, k_x = jax.random.split(key)

    B, IN_SHAPE, NUM_ACTIONS, HIDDEN = 64, 32, 4, 256
    params = init_params(k_params, IN_SHAPE, NUM_ACTIONS, hidden_dim=HIDDEN)
    x = jax.random.normal(k_x, (B, IN_SHAPE), jnp.float32)

    kparams = pad_params_for_kernel(params)
    ref = _ref_forward(x, params)

    # f32 output (exact PyTorch-parity path); B=64 -> 2 grid steps (both TCs on v7x)
    out = jax.block_until_ready(model_free_agent_forward(x, kparams))
    assert out.shape == (B, HIDDEN) and out.dtype == jnp.float32
    assert jnp.allclose(out, ref, atol=1e-5, rtol=1e-5)

    # bf16-at-HBM-boundary path (bandwidth optimization; accumulation still f32)
    out_bf16 = jax.block_until_ready(
        model_free_agent_forward(x, kparams, out_dtype=jnp.bfloat16))
    assert out_bf16.dtype == jnp.bfloat16
    assert jnp.allclose(out_bf16.astype(jnp.float32), ref, atol=5e-2, rtol=5e-2)

    # ragged tail path (B=10, bt=8 -> last block has 2 valid rows, masked writes)
    out_tail = jax.block_until_ready(model_free_agent_forward(x[:10], kparams))
    assert out_tail.shape == (10, HIDDEN)
    assert jnp.allclose(out_tail, ref[:10], atol=1e-5, rtol=1e-5)

    print("KERNEL_OK")
</pallas_src>

<mosaic_0001>
module attributes {stable_mosaic.version = 11 : i64} {
  func.func @_mlp_kernel(%arg0: i32, %arg1: memref<32x32xf32, #tpu.memory_space<vmem>>, %arg2: memref<32x128xf32, #tpu.memory_space<vmem>>, %arg3: memref<1x128xf32, #tpu.memory_space<vmem>>, %arg4: memref<128x128xf32, #tpu.memory_space<vmem>>, %arg5: memref<1x128xf32, #tpu.memory_space<vmem>>, %arg6: memref<128x256xf32, #tpu.memory_space<vmem>>, %arg7: memref<1x256xf32, #tpu.memory_space<vmem>>, %arg8: memref<32x256xf32, #tpu.memory_space<vmem>>) attributes {dimension_semantics = [#tpu.dimension_semantics<parallel>], iteration_bounds = array<i64: 2>, scalar_prefetch = 0 : i64, scratch_operands = 0 : i64, tpu.core_type = #tpu.core_type<tc>, window_params = [{transform_indices = @transform_0, window_bounds = array<i64: 32, 32>}, {pipeline_mode = #tpu.pipeline_mode<synchronous>, transform_indices = @transform_1, window_bounds = array<i64: 32, 128>}, {pipeline_mode = #tpu.pipeline_mode<synchronous>, transform_indices = @transform_2, window_bounds = array<i64: 1, 128>}, {pipeline_mode = #tpu.pipeline_mode<synchronous>, transform_indices = @transform_3, window_bounds = array<i64: 128, 128>}, {pipeline_mode = #tpu.pipeline_mode<synchronous>, transform_indices = @transform_4, window_bounds = array<i64: 1, 128>}, {pipeline_mode = #tpu.pipeline_mode<synchronous>, transform_indices = @transform_5, window_bounds = array<i64: 128, 256>}, {pipeline_mode = #tpu.pipeline_mode<synchronous>, transform_indices = @transform_6, window_bounds = array<i64: 1, 256>}, {transform_indices = @transform_7, window_bounds = array<i64: 32, 256>}]} {
    %c0 = arith.constant 0 : index
    %c0_0 = arith.constant 0 : index
    %0 = vector.load %arg1[%c0, %c0_0] : memref<32x32xf32, #tpu.memory_space<vmem>>, vector<32x32xf32>
    %c0_1 = arith.constant 0 : index
    %c0_2 = arith.constant 0 : index
    %1 = vector.load %arg2[%c0_1, %c0_2] : memref<32x128xf32, #tpu.memory_space<vmem>>, vector<32x128xf32>
    %cst = arith.constant dense<0.000000e+00> : vector<32x128xf32>
    %2 = tpu.matmul %0, %1, %cst {dimension_numbers = #tpu.dot_dimension_numbers<[1], [0], [0], [1], [0, 0, 1, 1], [], []>} : vector<32x32xf32>, vector<32x128xf32>, vector<32x128xf32> -> vector<32x128xf32>
    %c0_3 = arith.constant 0 : index
    %c0_4 = arith.constant 0 : index
    %3 = vector.load %arg3[%c0_3, %c0_4] : memref<1x128xf32, #tpu.memory_space<vmem>>, vector<1x128xf32>
    %4 = vector.broadcast %3 : vector<1x128xf32> to vector<32x128xf32>
    %5 = arith.addf %2, %4 : vector<32x128xf32>
    %cst_5 = arith.constant 0.000000e+00 : f32
    %6 = vector.broadcast %cst_5 : f32 to vector<32x128xf32>
    %7 = arith.maximumf %5, %6 : vector<32x128xf32>
    %c0_6 = arith.constant 0 : index
    %c0_7 = arith.constant 0 : index
    %8 = vector.load %arg4[%c0_6, %c0_7] : memref<128x128xf32, #tpu.memory_space<vmem>>, vector<128x128xf32>
    %cst_8 = arith.constant dense<0.000000e+00> : vector<32x128xf32>
    %9 = tpu.matmul %7, %8, %cst_8 {dimension_numbers = #tpu.dot_dimension_numbers<[1], [0], [0], [1], [0, 0, 1, 1], [], []>} : vector<32x128xf32>, vector<128x128xf32>, vector<32x128xf32> -> vector<32x128xf32>
    %c0_9 = arith.constant 0 : index
    %c0_10 = arith.constant 0 : index
    %10 = vector.load %arg5[%c0_9, %c0_10] : memref<1x128xf32, #tpu.memory_space<vmem>>, vector<1x128xf32>
    %11 = vector.broadcast %10 : vector<1x128xf32> to vector<32x128xf32>
    %12 = arith.addf %9, %11 : vector<32x128xf32>
    %cst_11 = arith.constant 0.000000e+00 : f32
    %13 = vector.broadcast %cst_11 : f32 to vector<32x128xf32>
    %14 = arith.maximumf %12, %13 : vector<32x128xf32>
    %c0_12 = arith.constant 0 : index
    %c0_13 = arith.constant 0 : index
    %15 = vector.load %arg6[%c0_12, %c0_13] : memref<128x256xf32, #tpu.memory_space<vmem>>, vector<128x256xf32>
    %cst_14 = arith.constant dense<0.000000e+00> : vector<32x256xf32>
    %16 = tpu.matmul %14, %15, %cst_14 {dimension_numbers = #tpu.dot_dimension_numbers<[1], [0], [0], [1], [0, 0, 1, 1], [], []>} : vector<32x128xf32>, vector<128x256xf32>, vector<32x256xf32> -> vector<32x256xf32>
    %c0_15 = arith.constant 0 : index
    %c0_16 = arith.constant 0 : index
    %17 = vector.load %arg7[%c0_15, %c0_16] : memref<1x256xf32, #tpu.memory_space<vmem>>, vector<1x256xf32>
    %18 = vector.broadcast %17 : vector<1x256xf32> to vector<32x256xf32>
    %19 = arith.addf %16, %18 : vector<32x256xf32>
    %cst_17 = arith.constant 0.000000e+00 : f32
    %20 = vector.broadcast %cst_17 : f32 to vector<32x256xf32>
    %21 = arith.maximumf %19, %20 : vector<32x256xf32>
    %c0_18 = arith.constant 0 : index
    %c0_19 = arith.constant 0 : index
    %22 = vector.load %arg8[%c0_18, %c0_19] : memref<32x256xf32, #tpu.memory_space<vmem>>, vector<32x256xf32>
    tpu.vector_store %arg8[%c0_18, %c0_19], %21 {strides = array<i32>} : memref<32x256xf32, #tpu.memory_space<vmem>>, vector<32x256xf32>,
    return
  }
  func.func @transform_0(%arg0: i32) -> (i32, i32) {
    %c0_i32 = arith.constant 0 : i32
    %c0_i32_0 = arith.constant 0 : i32
    return %arg0, %c0_i32 : i32, i32
  }
  func.func @transform_1(%arg0: i32) -> (i32, i32) {
    %c0_i32 = arith.constant 0 : i32
    %c0_i32_0 = arith.constant 0 : i32
    %c0_i32_1 = arith.constant 0 : i32
    return %c0_i32, %c0_i32_0 : i32, i32
  }
  func.func @transform_2(%arg0: i32) -> (i32, i32) {
    %c0_i32 = arith.constant 0 : i32
    %c0_i32_0 = arith.constant 0 : i32
    %c0_i32_1 = arith.constant 0 : i32
    return %c0_i32, %c0_i32_0 : i32, i32
  }
  func.func @transform_3(%arg0: i32) -> (i32, i32) {
    %c0_i32 = arith.constant 0 : i32
    %c0_i32_0 = arith.constant 0 : i32
    %c0_i32_1 = arith.constant 0 : i32
    return %c0_i32, %c0_i32_0 : i32, i32
  }
  func.func @transform_4(%arg0: i32) -> (i32, i32) {
    %c0_i32 = arith.constant 0 : i32
    %c0_i32_0 = arith.constant 0 : i32
    %c0_i32_1 = arith.constant 0 : i32
    return %c0_i32, %c0_i32_0 : i32, i32
  }
  func.func @transform_5(%arg0: i32) -> (i32, i32) {
    %c0_i32 = arith.constant 0 : i32
    %c0_i32_0 = arith.constant 0 : i32
    %c0_i32_1 = arith.constant 0 : i32
    return %c0_i32, %c0_i32_0 : i32, i32
  }
  func.func @transform_6(%arg0: i32) -> (i32, i32) {
    %c0_i32 = arith.constant 0 : i32
    %c0_i32_0 = arith.constant 0 : i32
    %c0_i32_1 = arith.constant 0 : i32
    return %c0_i32, %c0_i32_0 : i32, i32
  }
  func.func @transform_7(%arg0: i32) -> (i32, i32) {
    %c0_i32 = arith.constant 0 : i32
    %c0_i32_0 = arith.constant 0 : i32
    return %arg0, %c0_i32 : i32, i32
  }
}

</mosaic_0001>

<llo_original>
// kernel: tpu_custom_call.1
$region0: #{tpu_custom_call.1}
  #allocation0 [shape = 'u32[]', space=smem, size = 0x4, offset = 0x4, fixed_abs, tag = 'smem constant byte address 0x4 - core index']
  #allocation1 [shape = 'u32[72,128]{1,0:T(1,128)}', space=vmem, size = 0x9000, scoped, tag = 'internal scratch']
  %s0 = inlined_call_operand.vmem [shape: f32[64,32], index: 0, kind: input, shape index: {}]
  %s1 = inlined_call_operand.vmem [shape: f32[32,128], index: 1, kind: input, shape index: {}]
  %s2 = inlined_call_operand.vmem [shape: f32[1,128], index: 2, kind: input, shape index: {}]
  %s3 = inlined_call_operand.hbm [shape: f32[128,128], index: 3, kind: input, shape index: {}]
  %s4 = inlined_call_operand.vmem [shape: f32[1,128], index: 4, kind: input, shape index: {}]
  %s5 = inlined_call_operand.hbm [shape: f32[128,256], index: 5, kind: input, shape index: {}]
  %s6 = inlined_call_operand.vmem [shape: f32[1,256], index: 6, kind: input, shape index: {}]
  %s7 = inlined_call_operand.hbm [shape: f32[64,256], index: 7, kind: output, shape index: {}]
  %s8 = sld [smem:[#allocation0]]
  $region69: #{tpu_custom_call.1} parent=0
    _
  %s10 = ssub.s32 1, %s8
  %s11 = scalar_select 0, %s10, %s8
  $region1: #{tpu_custom_call.1} parent=0
    #allocation2 [shape = 'u8[65536]{0}', space=vmem, size = 0x10000, scoped, tag = 'input window, operand 3, single buffered']
    #allocation3 [shape = 's32[2]{0}', space=sflag, size = 0x8, scoped, tag = 'scoped memory for tpu_custom_call.1']
    #allocation4 [shape = 's32[2]{0}', space=sflag, size = 0x8, scoped, tag = 'scoped memory for tpu_custom_call.1']
    #allocation5 [shape = 'u8[131072]{0}', space=vmem, size = 0x20000, scoped, tag = 'input window, operand 5, single buffered']
    #allocation6 [shape = 's32[1]{0}', space=sflag, size = 0x4, scoped, tag = 'scoped memory for tpu_custom_call.1']
    #allocation7 [shape = 'u8[65536]{0}', space=vmem, size = 0x10000, scoped, tag = 'output window, operand 0']
    %12 = vsyncpa [#allocation3], 0
    %13 = vsyncpa [#allocation6], 0
    %14 = vsyncpa [#allocation4], 0
    %s15 = scalar_lea.sflag [#allocation4], 1
    %16 = vsyncpa %s15, 0
    loop: start=0, step=1, limit=4
    $region2: #{tpu_custom_call.1} parent=1 // loop_pre_header
      _
    $region3: #{tpu_custom_call.1} parent=1 // loop_header
      %s18 = sphi 0, %s22
      %p19 = scmp.ge.s32.totalorder %s18, 4
      %s28 = sphi 0, %s30
      %s31 = sphi 0, %s28
      %s32 = sphi 0, %s31
      %s48 = sphi 0, %s32
      %s52 = sphi 0, %s52
      %s54 = sphi 0, %s52
      %s55 = sphi 0, %s54
      %s69 = sphi 0, %s55
      %s73 = sphi 0, %s73
      %s75 = sphi 0, %s73
      %s76 = sphi 0, %s75
      %s90 = sphi 0, %s76
      %s94 = sphi 0, %s94
      %s96 = sphi 0, %s94
      %s97 = sphi 0, %s96
      %s111 = sphi 0, %s97
      %s115 = sphi 0, %s115
      %s117 = sphi 0, %s115
      %s118 = sphi 0, %s117
      %s132 = sphi 0, %s118
      %s136 = sphi 0, %s136
      %s138 = sphi 0, %s136
      %s139 = sphi 0, %s138
      %s153 = sphi 0, %s139
      %s157 = sphi 0, %s157
      %s159 = sphi 0, %s157
      %s160 = sphi 0, %s159
      %s174 = sphi 0, %s160
      %s180 = sphi 0, %s182
      %s183 = sphi 0, %s180
      %s184 = sphi 0, %s183
      %s200 = sphi 0, %s184
    $region4: #{tpu_custom_call.1} parent=1 // loop_header_branch
      %21 = sbr.rel (%p19) target = $region8
    $region5: #{tpu_custom_call.1} parent=1 // loop_body
      %s23 = ssub.s32 %s18, 1
      %s24 = ssub.s32 %s18, 2
      %s25 = sadd.s32 %s18, 1
      %s26 = ssub.s32 %s18, %s25
      %p27 = scmp.eq.s32.totalorder %s26, 0
      %s29 = sadd.s32 %s28, 1
      %s30 = scalar_select %p27, %s28, %s29
      %p33 = pneg %p27
      %p34 = scmp.eq.s32.totalorder %s18, 1
      %p35 = por %p33, %p34
      %p36 = scmp.ne.s32.totalorder %s28, %s31
      %p37 = scmp.eq.s32.totalorder %s18, 0
      %p38 = por %p36, %p37
      %p39 = scmp.ne.s32.totalorder %s28, %s31
      %p40 = scmp.eq.s32.totalorder %s23, 1
      %p41 = por %p39, %p40
      %p42 = scmp.ne.s32.totalorder %s31, %s32
      %p43 = scmp.eq.s32.totalorder %s23, 0
      %p44 = por %p42, %p43
      %p45 = scmp.ne.s32.totalorder %s31, %s32
      %p46 = scmp.eq.s32.totalorder %s24, 1
      %p47 = por %p45, %p46
      %p49 = scmp.ne.s32.totalorder %s32, %s48
      %p50 = scmp.eq.s32.totalorder %s24, 0
      %p51 = por %p49, %p50
      %s53 = sadd.s32 %s52, 1
      %p56 = scmp.eq.s32.totalorder %s18, 1
      %p57 = scmp.ne.s32.totalorder %s52, %s54
      %p58 = scmp.eq.s32.totalorder %s18, 0
      %p59 = por %p57, %p58
      %p60 = scmp.ne.s32.totalorder %s52, %s54
      %p61 = scmp.eq.s32.totalorder %s23, 1
      %p62 = por %p60, %p61
      %p63 = scmp.ne.s32.totalorder %s54, %s55
      %p64 = scmp.eq.s32.totalorder %s23, 0
      %p65 = por %p63, %p64
      %p66 = scmp.ne.s32.totalorder %s54, %s55
      %p67 = scmp.eq.s32.totalorder %s24, 1
      %p68 = por %p66, %p67
      %p70 = scmp.ne.s32.totalorder %s55, %s69
      %p71 = scmp.eq.s32.totalorder %s24, 0
      %p72 = por %p70, %p71
      %s74 = sadd.s32 %s73, 1
      %p77 = scmp.eq.s32.totalorder %s18, 1
      %p78 = scmp.ne.s32.totalorder %s73, %s75
      %p79 = scmp.eq.s32.totalorder %s18, 0
      %p80 = por %p78, %p79
      %p81 = scmp.ne.s32.totalorder %s73, %s75
      %p82 = scmp.eq.s32.totalorder %s23, 1
      %p83 = por %p81, %p82
      %p84 = scmp.ne.s32.totalorder %s75, %s76
      %p85 = scmp.eq.s32.totalorder %s23, 0
      %p86 = por %p84, %p85
      %p87 = scmp.ne.s32.totalorder %s75, %s76
      %p88 = scmp.eq.s32.totalorder %s24, 1
      %p89 = por %p87, %p88
      %p91 = scmp.ne.s32.totalorder %s76, %s90
      %p92 = scmp.eq.s32.totalorder %s24, 0
      %p93 = por %p91, %p92
      %s95 = sadd.s32 %s94, 1
      %p98 = scmp.eq.s32.totalorder %s18, 1
      %p99 = scmp.ne.s32.totalorder %s94, %s96
      %p100 = scmp.eq.s32.totalorder %s18, 0
      %p101 = por %p99, %p100
      %p102 = scmp.ne.s32.totalorder %s94, %s96
      %p103 = scmp.eq.s32.totalorder %s23, 1
      %p104 = por %p102, %p103
      %p105 = scmp.ne.s32.totalorder %s96, %s97
      %p106 = scmp.eq.s32.totalorder %s23, 0
      %p107 = por %p105, %p106
      %p108 = scmp.ne.s32.totalorder %s96, %s97
      %p109 = scmp.eq.s32.totalorder %s24, 1
      %p110 = por %p108, %p109
      %p112 = scmp.ne.s32.totalorder %s97, %s111
      %p113 = scmp.eq.s32.totalorder %s24, 0
      %p114 = por %p112, %p113
      %s116 = sadd.s32 %s115, 1
      %p119 = scmp.eq.s32.totalorder %s18, 1
      %p120 = scmp.ne.s32.totalorder %s115, %s117
      %p121 = scmp.eq.s32.totalorder %s18, 0
      %p122 = por %p120, %p121
      %p123 = scmp.ne.s32.totalorder %s115, %s117
      %p124 = scmp.eq.s32.totalorder %s23, 1
      %p125 = por %p123, %p124
      %p126 = scmp.ne.s32.totalorder %s117, %s118
      %p127 = scmp.eq.s32.totalorder %s23, 0
      %p128 = por %p126, %p127
      %p129 = scmp.ne.s32.totalorder %s117, %s118
      %p130 = scmp.eq.s32.totalorder %s24, 1
      %p131 = por %p129, %p130
      %p133 = scmp.ne.s32.totalorder %s118, %s132
      %p134 = scmp.eq.s32.totalorder %s24, 0
      %p135 = por %p133, %p134
      %s137 = sadd.s32 %s136, 1
      %p140 = scmp.eq.s32.totalorder %s18, 1
      %p141 = scmp.ne.s32.totalorder %s136, %s138
      %p142 = scmp.eq.s32.totalorder %s18, 0
      %p143 = por %p141, %p142
      %p144 = scmp.ne.s32.totalorder %s136, %s138
      %p145 = scmp.eq.s32.totalorder %s23, 1
      %p146 = por %p144, %p145
      %p147 = scmp.ne.s32.totalorder %s138, %s139
      %p148 = scmp.eq.s32.totalorder %s23, 0
      %p149 = por %p147, %p148
      %p150 = scmp.ne.s32.totalorder %s138, %s139
      %p151 = scmp.eq.s32.totalorder %s24, 1
      %p152 = por %p150, %p151
      %p154 = scmp.ne.s32.totalorder %s139, %s153
      %p155 = scmp.eq.s32.totalorder %s24, 0
      %p156 = por %p154, %p155
      %s158 = sadd.s32 %s157, 1
      %p161 = scmp.eq.s32.totalorder %s18, 1
      %p162 = scmp.ne.s32.totalorder %s157, %s159
      %p163 = scmp.eq.s32.totalorder %s18, 0
      %p164 = por %p162, %p163
      %p165 = scmp.ne.s32.totalorder %s157, %s159
      %p166 = scmp.eq.s32.totalorder %s23, 1
      %p167 = por %p165, %p166
      %p168 = scmp.ne.s32.totalorder %s159, %s160
      %p169 = scmp.eq.s32.totalorder %s23, 0
      %p170 = por %p168, %p169
      %p171 = scmp.ne.s32.totalorder %s159, %s160
      %p172 = scmp.eq.s32.totalorder %s24, 1
      %p173 = por %p171, %p172
      %p175 = scmp.ne.s32.totalorder %s160, %s174
      %p176 = scmp.eq.s32.totalorder %s24, 0
      %p177 = por %p175, %p176
      %s178 = ssub.s32 %s18, %s25
      %p179 = scmp.eq.s32.totalorder %s178, 0
      %s181 = sadd.s32 %s180, 1
      %s182 = scalar_select %p179, %s180, %s181
      %p185 = pneg %p179
      %p186 = scmp.eq.s32.totalorder %s18, 1
      %p187 = por %p185, %p186
      %p188 = scmp.ne.s32.totalorder %s180, %s183
      %p189 = scmp.eq.s32.totalorder %s18, 0
      %p190 = por %p188, %p189
      %p191 = scmp.ne.s32.totalorder %s180, %s183
      %p192 = scmp.eq.s32.totalorder %s23, 1
      %p193 = por %p191, %p192
      %p194 = scmp.ne.s32.totalorder %s183, %s184
      %p195 = scmp.eq.s32.totalorder %s23, 0
      %p196 = por %p194, %p195
      %p197 = scmp.ne.s32.totalorder %s183, %s184
      %p198 = scmp.eq.s32.totalorder %s24, 1
      %p199 = por %p197, %p198
      %p201 = scmp.ne.s32.totalorder %s184, %s200
      %p202 = scmp.eq.s32.totalorder %s24, 0
      %p203 = por %p201, %p202
      %p204 = scmp.le.s32.totalorder 1, %s18
      %p205 = scmp.lt.s32.totalorder %s18, 3
      %p206 = pnand %p204, %p205
      %p207 = pneg %p206
      // Predicated region
      $region9: #{tpu_custom_call.1} parent=5 // pred_check
        _
      $region10: #{tpu_custom_call.1} parent=5 // pred_check_branch
        %209 = sbr.rel (%p206) target = $region12
      $region11: #{tpu_custom_call.1} parent=5 // pred_region
        %s210 = ssub.s32 %s18, 1
        // Predicated region
        $region13: #{tpu_custom_call.1} parent=11 // pred_check
          %p211 = pneg %p65
        $region14: #{tpu_custom_call.1} parent=11 // pred_check_branch
          %213 = sbr.rel (%p211) target = $region16
        $region15: #{tpu_custom_call.1} parent=11 // pred_region
          _
        $region16: #{tpu_custom_call.1} parent=11 // pred_fallthru
          _
        // Predicated region
        $region17: #{tpu_custom_call.1} parent=11 // pred_check
          %p214 = pneg %p86
        $region18: #{tpu_custom_call.1} parent=11 // pred_check_branch
          %216 = sbr.rel (%p214) target = $region20
        $region19: #{tpu_custom_call.1} parent=11 // pred_region
          _
        $region20: #{tpu_custom_call.1} parent=11 // pred_fallthru
          _
        // Predicated region
        $region21: #{tpu_custom_call.1} parent=11 // pred_check
          %p217 = pneg %p107
        $region22: #{tpu_custom_call.1} parent=11 // pred_check_branch
          %219 = sbr.rel (%p217) target = $region24
        $region23: #{tpu_custom_call.1} parent=11 // pred_region
          %221 = vsyncadd [#allocation3], 0
          %s222 = sshll.u32 %s3, 4
          %s223 = int_to_ptr.hbm [resolvable:$true] %s222
          %s224 = sshll.u32 [#allocation2], 4
          %s225 = int_to_ptr.vmem [resolvable:$true] %s224
          %230 = dma.hbm_to_vmem [thread:$0]  %s223, 2048, %s225, [#allocation3], 128, 128, 8
        $region24: #{tpu_custom_call.1} parent=11 // pred_fallthru
          _
        // Predicated region
        $region25: #{tpu_custom_call.1} parent=11 // pred_check
          %p231 = pneg %p128
        $region26: #{tpu_custom_call.1} parent=11 // pred_check_branch
          %233 = sbr.rel (%p231) target = $region28
        $region27: #{tpu_custom_call.1} parent=11 // pred_region
          _
        $region28: #{tpu_custom_call.1} parent=11 // pred_fallthru
          _
        // Predicated region
        $region29: #{tpu_custom_call.1} parent=11 // pred_check
          %p234 = pneg %p149
        $region30: #{tpu_custom_call.1} parent=11 // pred_check_branch
          %236 = sbr.rel (%p234) target = $region32
        $region31: #{tpu_custom_call.1} parent=11 // pred_region
          %238 = vsyncadd [#allocation6], 0
          %s239 = sshll.u32 %s5, 4
          %s240 = int_to_ptr.hbm [resolvable:$true] %s239
          %s241 = sshll.u32 [#allocation5], 4
          %s242 = int_to_ptr.vmem [resolvable:$true] %s241
          %247 = dma.hbm_to_vmem [thread:$0]  %s240, 4096, %s242, [#allocation6], 256, 256, 16
        $region32: #{tpu_custom_call.1} parent=11 // pred_fallthru
          _
        // Predicated region
        $region33: #{tpu_custom_call.1} parent=11 // pred_check
          %p248 = pneg %p170
        $region34: #{tpu_custom_call.1} parent=11 // pred_check_branch
          %250 = sbr.rel (%p248) target = $region36
        $region35: #{tpu_custom_call.1} parent=11 // pred_region
          _
        $region36: #{tpu_custom_call.1} parent=11 // pred_fallthru
          _
      $region12: #{tpu_custom_call.1} parent=5 // pred_fallthru
        _
      %p251 = scmp.lt.s32.totalorder %s18, 2
      // Predicated region
      $region37: #{tpu_custom_call.1} parent=5 // pred_check
        %p252 = pneg %p251
      $region38: #{tpu_custom_call.1} parent=5 // pred_check_branch
        %254 = sbr.rel (%p252) target = $region40
      $region39: #{tpu_custom_call.1} parent=5 // pred_region
        // Predicated region
        $region41: #{tpu_custom_call.1} parent=39 // pred_check
          %p255 = pneg %p38
        $region42: #{tpu_custom_call.1} parent=39 // pred_check_branch
          %257 = sbr.rel (%p255) target = $region44
        $region43: #{tpu_custom_call.1} parent=39 // pred_region
          %s258 = smul.u32 4, %s18
          %p259 = scmp.lt.s32.totalorder %s258, 7
          %s260 = scalar_select %p259, %s258, 7
          %s261 = smul.addr %s260, 8
          %s262 = scalar_lea.vmem %s0, %s261
          %s263 = smul.u32 4, %s18
        $region44: #{tpu_custom_call.1} parent=39 // pred_fallthru
          _
      $region40: #{tpu_custom_call.1} parent=5 // pred_fallthru
        _
      %p264 = scmp.le.s32.totalorder 1, %s18
      %p265 = scmp.lt.s32.totalorder %s18, 3
      %p266 = pnand %p264, %p265
      %p267 = pneg %p266
      // Predicated region
      $region45: #{tpu_custom_call.1} parent=5 // pred_check
        _
      $region46: #{tpu_custom_call.1} parent=5 // pred_check_branch
        %269 = sbr.rel (%p266) target = $region48
      $region47: #{tpu_custom_call.1} parent=5 // pred_region
        %s270 = ssub.s32 %s18, 1
        // Predicated region
        $region49: #{tpu_custom_call.1} parent=47 // pred_check
          %p271 = pneg %p107
        $region50: #{tpu_custom_call.1} parent=47 // pred_check_branch
          %273 = sbr.rel (%p271) target = $region52
        $region51: #{tpu_custom_call.1} parent=47 // pred_region
          %275 = dma.done [#allocation3], 2048
        $region52: #{tpu_custom_call.1} parent=47 // pred_fallthru
          _
        // Predicated region
        $region53: #{tpu_custom_call.1} parent=47 // pred_check
          %p276 = pneg %p149
        $region54: #{tpu_custom_call.1} parent=47 // pred_check_branch
          %278 = sbr.rel (%p276) target = $region56
        $region55: #{tpu_custom_call.1} parent=47 // pred_region
          %280 = dma.done [#allocation6], 4096
        $region56: #{tpu_custom_call.1} parent=47 // pred_fallthru
          _
        %s281 = smul.u32 4, %s23
        %p282 = scmp.lt.s32.totalorder %s281, 7
        %s283 = scalar_select %p282, %s281, 7
        %s284 = smul.addr %s283, 8
        %s285 = scalar_lea.vmem %s0, %s284
        %p286 = pneg %p44
        %p287 = pneg %p41
        %p288 = pneg %p65
        %p289 = pneg %p62
        %p290 = pneg %p86
        %p291 = pneg %p83
        %p292 = pneg %p107
        %p293 = pneg %p104
        %p294 = pneg %p128
        %p295 = pneg %p125
        %p296 = pneg %p149
        %p297 = pneg %p146
        %p298 = pneg %p170
        %p299 = pneg %p167
        %p300 = pneg %p196
        %p301 = pneg %p193
        %s302 = sand.u32 %s183, 1
        %s303 = scalar_lea.sflag [#allocation4], %s302
        %s304 = sand.u32 %s183, 1
        %s305 = smul.addr %s304, 64
        %s306 = scalar_lea.vmem [#allocation7], %s305
        %s307 = smul.u32 4, %s23
        %p308 = scmp.lt.s32.totalorder %s307, 7
        %s309 = scalar_select %p308, %s307, 7
        %s310 = smul.addr %s309, 8
        %s311 = scalar_lea.vmem %s0, %s310
        %s312 = smul.u32 4, %s23
        %s313 = smul.u32 4, %s23
        %v314 = vld [vmem:[%s311] sm:$0xff]
        %v315 = vld [vmem:[%s311 + $0x8] sm:$0xff]
        %v316 = vld [vmem:[%s311 + $0x10] sm:$0xff]
        %v317 = vld [vmem:[%s311 + $0x18] sm:$0xff]
        %v318 = vld [vmem:[%s1] sm:$0xff]
        %v319 = vld [vmem:[%s1 + $0x8] sm:$0xff]
        %v320 = vld [vmem:[%s1 + $0x10] sm:$0xff]
        %v321 = vld [vmem:[%s1 + $0x18] sm:$0xff]
        %v322 = vld [vmem:[%s2] sm:$0x1]
        %v324 = vperm.slane %v322, 0
        %vm326 = vcmask 261120
        %v328 = vsel %vm326, %v314, 0
        %v331 = vsel %vm326, %v315, 0
        %v334 = vsel %vm326, %v316, 0
        %v337 = vsel %vm326, %v317, 0
        %339 = vmatpush.msra.mxu0 0.0
        %340 = vmatpush.msra.mxu0 0.0
        %341 = vmatpush.msra.mxu0 0.0
        %342 = vmatpush.msra.mxu0 0.0
        %343 = vmatpush.msra.mxu0 0.0
        %344 = vmatpush.msra.mxu0 0.0
        %345 = vmatpush.msra.mxu0 0.0
        %346 = vmatpush.msra.mxu0 0.0
        %347 = vmatpush.msra.mxu0 0.0
        %348 = vmatpush.msra.mxu0 0.0
        %349 = vmatpush.msra.mxu0 0.0
        %350 = vmatpush.msra.mxu0 0.0
        %351 = vmatpush.msra.mxu0 %v321
        %352 = vmatpush.msra.mxu0 %v320
        %353 = vmatpush.msra.mxu0 %v319
        %354 = vmatpush.msra.mxu0 %v318
        %355 = vmatmul.f32.gmra.mxu0 %v328
        %v356 = vpop.f32.mrf.mxu0
        %v357 = vadd.f32 %v324, %v356
        %358 = vmatmul.f32.gmra.mxu0 %v331
        %v359 = vpop.f32.mrf.mxu0
        %v360 = vadd.f32 %v324, %v359
        %361 = vmatmul.f32.gmra.mxu0 %v334
        %v362 = vpop.f32.mrf.mxu0
        %v363 = vadd.f32 %v324, %v362
        %364 = vmatmul.f32.gmra.mxu0 %v337
        %v365 = vpop.f32.mrf.mxu0
        %v366 = vadd.f32 %v324, %v365
        %367 = vdwg.mxu0
        %v368 = vmax.f32 %v357, 0.0
        %v369 = vmax.f32 %v360, 0.0
        %v370 = vmax.f32 %v363, 0.0
        %v371 = vmax.f32 %v366, 0.0
        %v372 = vld [vmem:[#allocation2] sm:$0xff]
        %v373 = vld [vmem:[#allocation2 + $0x8] sm:$0xff]
        %v374 = vld [vmem:[#allocation2 + $0x10] sm:$0xff]
        %v375 = vld [vmem:[#allocation2 + $0x18] sm:$0xff]
        %v376 = vld [vmem:[#allocation2 + $0x20] sm:$0xff]
        %v377 = vld [vmem:[#allocation2 + $0x28] sm:$0xff]
        %v378 = vld [vmem:[#allocation2 + $0x30] sm:$0xff]
        %v379 = vld [vmem:[#allocation2 + $0x38] sm:$0xff]
        %v380 = vld [vmem:[#allocation2 + $0x40] sm:$0xff]
        %v381 = vld [vmem:[#allocation2 + $0x48] sm:$0xff]
        %v382 = vld [vmem:[#allocation2 + $0x50] sm:$0xff]
        %v383 = vld [vmem:[#allocation2 + $0x58] sm:$0xff]
        %v384 = vld [vmem:[#allocation2 + $0x60] sm:$0xff]
        %v385 = vld [vmem:[#allocation2 + $0x68] sm:$0xff]
        %v386 = vld [vmem:[#allocation2 + $0x70] sm:$0xff]
        %v387 = vld [vmem:[#allocation2 + $0x78] sm:$0xff]
        %v388 = vld [vmem:[%s4] sm:$0x1]
        %v390 = vperm.slane %v388, 0
        %392 = vmatpush.msra.mxu0 %v387
        %393 = vmatpush.msra.mxu0 %v386
        %394 = vmatpush.msra.mxu0 %v385
        %395 = vmatpush.msra.mxu0 %v384
        %396 = vmatpush.msra.mxu0 %v383
        %397 = vmatpush.msra.mxu0 %v382
        %398 = vmatpush.msra.mxu0 %v381
        %399 = vmatpush.msra.mxu0 %v380
        %400 = vmatpush.msra.mxu0 %v379
        %401 = vmatpush.msra.mxu0 %v378
        %402 = vmatpush.msra.mxu0 %v377
        %403 = vmatpush.msra.mxu0 %v376
        %404 = vmatpush.msra.mxu0 %v375
        %405 = vmatpush.msra.mxu0 %v374
        %406 = vmatpush.msra.mxu0 %v373
        %407 = vmatpush.msra.mxu0 %v372
        %408 = vmatmul.f32.gmra.mxu0 %v368
        %v409 = vpop.f32.mrf.mxu0
        %v410 = vadd.f32 %v390, %v409
        %411 = vmatmul.f32.gmra.mxu0 %v369
        %v412 = vpop.f32.mrf.mxu0
        %v413 = vadd.f32 %v390, %v412
        %414 = vmatmul.f32.gmra.mxu0 %v370
        %v415 = vpop.f32.mrf.mxu0
        %v416 = vadd.f32 %v390, %v415
        %417 = vmatmul.f32.gmra.mxu0 %v371
        %v418 = vpop.f32.mrf.mxu0
        %v419 = vadd.f32 %v390, %v418
        %420 = vdwg.mxu0
        %v421 = vmax.f32 %v410, 0.0
        %v422 = vmax.f32 %v413, 0.0
        %v423 = vmax.f32 %v416, 0.0
        %v424 = vmax.f32 %v419, 0.0
        %v425 = vld [vmem:[#allocation5] sm:$0xff]
        %v426 = vld [vmem:[#allocation5 + $0x8] sm:$0xff]
        %v427 = vld [vmem:[#allocation5 + $0x10] sm:$0xff]
        %v428 = vld [vmem:[#allocation5 + $0x18] sm:$0xff]
        %v429 = vld [vmem:[#allocation5 + $0x20] sm:$0xff]
        %v430 = vld [vmem:[#allocation5 + $0x28] sm:$0xff]
        %v431 = vld [vmem:[#allocation5 + $0x30] sm:$0xff]
        %v432 = vld [vmem:[#allocation5 + $0x38] sm:$0xff]
        %v433 = vld [vmem:[#allocation5 + $0x40] sm:$0xff]
        %v434 = vld [vmem:[#allocation5 + $0x48] sm:$0xff]
        %v435 = vld [vmem:[#allocation5 + $0x50] sm:$0xff]
        %v436 = vld [vmem:[#allocation5 + $0x58] sm:$0xff]
        %v437 = vld [vmem:[#allocation5 + $0x60] sm:$0xff]
        %v438 = vld [vmem:[#allocation5 + $0x68] sm:$0xff]
        %v439 = vld [vmem:[#allocation5 + $0x70] sm:$0xff]
        %v440 = vld [vmem:[#allocation5 + $0x78] sm:$0xff]
        %v441 = vld [vmem:[#allocation5 + $0x80] sm:$0xff]
        %v442 = vld [vmem:[#allocation5 + $0x88] sm:$0xff]
        %v443 = vld [vmem:[#allocation5 + $0x90] sm:$0xff]
        %v444 = vld [vmem:[#allocation5 + $0x98] sm:$0xff]
        %v445 = vld [vmem:[#allocation5 + $0xa0] sm:$0xff]
        %v446 = vld [vmem:[#allocation5 + $0xa8] sm:$0xff]
        %v447 = vld [vmem:[#allocation5 + $0xb0] sm:$0xff]
        %v448 = vld [vmem:[#allocation5 + $0xb8] sm:$0xff]
        %v449 = vld [vmem:[#allocation5 + $0xc0] sm:$0xff]
        %v450 = vld [vmem:[#allocation5 + $0xc8] sm:$0xff]
        %v451 = vld [vmem:[#allocation5 + $0xd0] sm:$0xff]
        %v452 = vld [vmem:[#allocation5 + $0xd8] sm:$0xff]
        %v453 = vld [vmem:[#allocation5 + $0xe0] sm:$0xff]
        %v454 = vld [vmem:[#allocation5 + $0xe8] sm:$0xff]
        %v455 = vld [vmem:[#allocation5 + $0xf0] sm:$0xff]
        %v456 = vld [vmem:[#allocation5 + $0xf8] sm:$0xff]
        %v457 = vld [vmem:[%s6] sm:$0x3]
        %v459 = vperm.slane %v457, 0
        %v460 = vperm.slane %v457, 1
        %463 = vmatpush.msra.mxu0 %v455
        %464 = vmatpush.msra.mxu0 %v453
        %465 = vmatpush.msra.mxu0 %v451
        %466 = vmatpush.msra.mxu0 %v449
        %467 = vmatpush.msra.mxu0 %v447
        %468 = vmatpush.msra.mxu0 %v445
        %469 = vmatpush.msra.mxu0 %v443
        %470 = vmatpush.msra.mxu0 %v441
        %471 = vmatpush.msra.mxu0 %v439
        %472 = vmatpush.msra.mxu0 %v437
        %473 = vmatpush.msra.mxu0 %v435
        %474 = vmatpush.msra.mxu0 %v433
        %475 = vmatpush.msra.mxu0 %v431
        %476 = vmatpush.msra.mxu0 %v429
        %477 = vmatpush.msra.mxu0 %v427
        %478 = vmatpush.msra.mxu0 %v425
        %479 = vmatmul.f32.gmra.mxu0 %v421
        %v480 = vpop.f32.mrf.mxu0
        %v481 = vadd.f32 %v459, %v480
        %482 = vmatmul.f32.gmra.mxu0 %v422
        %v483 = vpop.f32.mrf.mxu0
        %v484 = vadd.f32 %v459, %v483
        %485 = vmatmul.f32.gmra.mxu0 %v423
        %v486 = vpop.f32.mrf.mxu0
        %v487 = vadd.f32 %v459, %v486
        %488 = vmatmul.f32.gmra.mxu0 %v424
        %v489 = vpop.f32.mrf.mxu0
        %v490 = vadd.f32 %v459, %v489
        %491 = vdwg.mxu0
        %492 = vmatpush.msra.mxu0 %v456
        %493 = vmatpush.msra.mxu0 %v454
        %494 = vmatpush.msra.mxu0 %v452
        %495 = vmatpush.msra.mxu0 %v450
        %496 = vmatpush.msra.mxu0 %v448
        %497 = vmatpush.msra.mxu0 %v446
        %498 = vmatpush.msra.mxu0 %v444
        %499 = vmatpush.msra.mxu0 %v442
        %500 = vmatpush.msra.mxu0 %v440
        %501 = vmatpush.msra.mxu0 %v438
        %502 = vmatpush.msra.mxu0 %v436
        %503 = vmatpush.msra.mxu0 %v434
        %504 = vmatpush.msra.mxu0 %v432
        %505 = vmatpush.msra.mxu0 %v430
        %506 = vmatpush.msra.mxu0 %v428
        %507 = vmatpush.msra.mxu0 %v426
        %508 = vmatmul.f32.gmra.mxu0 %v421
        %v509 = vpop.f32.mrf.mxu0
        %v510 = vadd.f32 %v460, %v509
        %511 = vmatmul.f32.gmra.mxu0 %v422
        %v512 = vpop.f32.mrf.mxu0
        %v513 = vadd.f32 %v460, %v512
        %514 = vmatmul.f32.gmra.mxu0 %v423
        %v515 = vpop.f32.mrf.mxu0
        %v516 = vadd.f32 %v460, %v515
        %517 = vmatmul.f32.gmra.mxu0 %v424
        %v518 = vpop.f32.mrf.mxu0
        %v519 = vadd.f32 %v460, %v518
        %520 = vdwg.mxu0
        %v521 = vmax.f32 %v481, 0.0
        %v522 = vmax.f32 %v510, 0.0
        %v523 = vmax.f32 %v484, 0.0
        %v524 = vmax.f32 %v513, 0.0
        %v525 = vmax.f32 %v487, 0.0
        %v526 = vmax.f32 %v516, 0.0
        %v527 = vmax.f32 %v490, 0.0
        %v528 = vmax.f32 %v519, 0.0
        %529 = vst [vmem:[%s306] sm:$0xff] %v521
        %530 = vst [vmem:[%s306 + $0x8] sm:$0xff] %v522
        %531 = vst [vmem:[%s306 + $0x10] sm:$0xff] %v523
        %532 = vst [vmem:[%s306 + $0x18] sm:$0xff] %v524
        %533 = vst [vmem:[%s306 + $0x20] sm:$0xff] %v525
        %534 = vst [vmem:[%s306 + $0x28] sm:$0xff] %v526
        %535 = vst [vmem:[%s306 + $0x30] sm:$0xff] %v527
        %536 = vst [vmem:[%s306 + $0x38] sm:$0xff] %v528
        %s537 = sand.u32 %s183, 1
        %s538 = scalar_lea.sflag [#allocation4], %s537
        %s539 = sand.u32 %s183, 1
        %s540 = smul.addr %s539, 64
        %s541 = scalar_lea.vmem [#allocation7], %s540
        // Predicated region
        $region57: #{tpu_custom_call.1} parent=47 // pred_check
          %p542 = pneg %p193
        $region58: #{tpu_custom_call.1} parent=47 // pred_check_branch
          %544 = sbr.rel (%p542) target = $region60
        $region59: #{tpu_custom_call.1} parent=47 // pred_region
          %s545 = smul.u32 4, %s23
          %547 = vsyncadd %s538, 0
          %s548 = smul.addr %s545, 2
          %s549 = smul.addr %s548, 8
          %s550 = scalar_lea.hbm %s7, %s549
          %s551 = sshll.u32 %s541, 4
          %s552 = int_to_ptr.vmem [resolvable:$true] %s551
          %s553 = sshll.u32 %s550, 4
          %s554 = int_to_ptr.hbm [resolvable:$true] %s553
          %559 = dma.vmem_to_hbm [thread:$0]  %s552, 1024, %s554, %s538, 256, 256, 16
        $region60: #{tpu_custom_call.1} parent=47 // pred_fallthru
          _
      $region48: #{tpu_custom_call.1} parent=5 // pred_fallthru
        _
      %p560 = scmp.le.s32.totalorder 2, %s18
      // Predicated region
      $region61: #{tpu_custom_call.1} parent=5 // pred_check
        %p561 = pneg %p560
      $region62: #{tpu_custom_call.1} parent=5 // pred_check_branch
        %563 = sbr.rel (%p561) target = $region64
      $region63: #{tpu_custom_call.1} parent=5 // pred_region
        %s564 = ssub.s32 %s18, 2
        // Predicated region
        $region65: #{tpu_custom_call.1} parent=63 // pred_check
          %p565 = pneg %p199
        $region66: #{tpu_custom_call.1} parent=63 // pred_check_branch
          %567 = sbr.rel (%p565) target = $region68
        $region67: #{tpu_custom_call.1} parent=63 // pred_region
          %s568 = sand.u32 %s184, 1
          %s569 = scalar_lea.sflag [#allocation4], %s568
          %s570 = sand.u32 %s184, 1
          %s571 = smul.addr %s570, 64
          %s572 = scalar_lea.vmem [#allocation7], %s571
          %574 = dma.done %s569, 1024
        $region68: #{tpu_custom_call.1} parent=63 // pred_fallthru
          _
      $region64: #{tpu_custom_call.1} parent=5 // pred_fallthru
        _
    $region6: #{tpu_custom_call.1} parent=1 // loop_footer
      %s22 = sadd.s32 1, %s18
    $region7: #{tpu_custom_call.1} parent=1 // loop_footer_branch
      %17 = sbr.rel target = $region3
    $region8: #{tpu_custom_call.1} parent=1 // loop_exit
      _
    %575 = vsyncpa [#allocation3], 1
    %s576 = scalar_lea.sflag [#allocation3], 1
    %577 = vsyncpa %s576, 1
    %578 = vsyncpa [#allocation6], 1
    %579 = vsyncpa [#allocation4], 1
    %s580 = scalar_lea.sflag [#allocation4], 1
    %581 = vsyncpa %s580, 1

</llo_original>
